<compile_context>
chip_gen: v7x
topology: tpu7x:2x2x1
jax: 0.10.0
libtpu: 0.0.40
codegen_flags: <defaults>
</compile_context>

<pallas_src>
import math
from functools import partial

import jax
import jax.numpy as jnp
from jax import lax
from jax.experimental import pallas as pl
from jax.experimental.pallas import tpu as pltpu


# ---------------------------------------------------------------------------
# Fused QKV projection kernel:  q = xq @ WqT + bq ; k = ... ; v = ...
# (weights are pre-transposed outside, so no in-kernel transpose)
# ---------------------------------------------------------------------------
def _qkv_proj_kernel(xq_ref, xk_ref, xv_ref, wq_ref, wk_ref, wv_ref, b_ref,
                     q_ref, k_ref, v_ref):
    q_ref[...] = (jnp.dot(xq_ref[...], wq_ref[...],
                          preferred_element_type=jnp.float32) + b_ref[0:1]
                  ).astype(q_ref.dtype)
    k_ref[...] = (jnp.dot(xk_ref[...], wk_ref[...],
                          preferred_element_type=jnp.float32) + b_ref[1:2]
                  ).astype(k_ref.dtype)
    v_ref[...] = (jnp.dot(xv_ref[...], wv_ref[...],
                          preferred_element_type=jnp.float32) + b_ref[2:3]
                  ).astype(v_ref.dtype)


def pallas_qkv_projection(xq, xk, xv, wq_t, wk_t, wv_t, b_stack, tm_hint=256):
    """xq/xk/xv: (M, E); w*_t: (E, E) already transposed; b_stack: (3, E)."""
    M, E = xq.shape
    tm = M if M <= tm_hint else tm_hint
    grid = (pl.cdiv(M, tm),)
    row_spec = pl.BlockSpec((tm, E), lambda i: (i, 0))
    w_spec = pl.BlockSpec((E, E), lambda i: (0, 0))
    return pl.pallas_call(
        _qkv_proj_kernel,
        out_shape=tuple(jax.ShapeDtypeStruct((M, E), jnp.float32) for _ in range(3)),
        grid=grid,
        in_specs=[row_spec, row_spec, row_spec, w_spec, w_spec, w_spec,
                  pl.BlockSpec((3, E), lambda i: (0, 0))],
        out_specs=(row_spec, row_spec, row_spec),
        compiler_params=pltpu.CompilerParams(
            dimension_semantics=("parallel",),
            vmem_limit_bytes=48 * 1024 * 1024),
    )(xq, xk, xv, wq_t, wk_t, wv_t, b_stack)


# ---------------------------------------------------------------------------
# Attention kernel: one (batch, q-tile) per grid step, static loop over heads.
# ---------------------------------------------------------------------------
def _softmax_lastdim(x):
    # Guarded softmax: fully -inf rows (fully masked) produce 0 instead of NaN.
    m = jnp.maximum(jnp.max(x, axis=-1, keepdims=True), jnp.float32(-1e30))
    e = jnp.exp(x - m)
    s = jnp.maximum(jnp.sum(e, axis=-1, keepdims=True), jnp.float32(1e-30))
    return e * pl.reciprocal(s, approx=True)


def _attn_kernel(l_ref, q_ref, k_ref, v_ref, rel_ref, ts_ref, mask_ref,
                 out_ref, attn_ref, *, num_heads, head_size):
    l1 = l_ref[0]
    l2 = l_ref[1]

    inv_sqrt = jnp.float32(1.0 / math.sqrt(head_size))
    q = q_ref[0] * inv_sqrt                        # (TQ, E) pre-scaled once
    k = k_ref[0]                                   # (S,  E)
    v = v_ref[0]                                   # (S,  E)
    rel = rel_ref[0]                               # (TQ, S)
    ts = ts_ref[0]                                 # (TQ, S)
    m_f = mask_ref[0].astype(jnp.float32)          # (TQ, S), 1.0 where masked
    masked = m_f > jnp.float32(0.0)

    # ---- head-invariant terms (computed once, reused for every head) ----
    # rel = rel * mask ; rel_attn = softmax(masked_fill(rel == 0, -10000))
    rel_m = rel * m_f
    rel_attn = _softmax_lastdim(
        jnp.where(rel_m == jnp.float32(0.0), jnp.float32(-10000.0), rel_m))
    # time_stamp = exp(-|timestamp|) masked_fill(mask, -inf) ; softmax
    time_attn = _softmax_lastdim(
        jnp.where(masked, -jnp.inf, jnp.exp(-jnp.abs(ts))))

    # prob = (1-l1)*((1-l2)*softmax(scores) + l2*time_attn) + l1*rel_attn
    combined = l1 * rel_attn + (jnp.float32(1.0) - l1) * l2 * time_attn
    p_scale = (jnp.float32(1.0) - l1) * (jnp.float32(1.0) - l2)

    # ---- per-head scores / blend / output ----
    outs = []
    for h in range(num_heads):
        lo = h * head_size
        hi = lo + head_size
        qh = q[:, lo:hi]                           # (TQ, Dh) (already scaled)
        kh = k[:, lo:hi]                           # (S,  Dh)
        vh = v[:, lo:hi]                           # (S,  Dh)
        # q @ k^T without an explicit transpose (contract last dims).
        scores = lax.dot_general(qh, kh, (((1,), (1,)), ((), ())),
                                 preferred_element_type=jnp.float32)
        scores = jnp.where(masked, jnp.float32(-1000000000.0), scores)
        prob = p_scale * _softmax_lastdim(scores) + combined
        # TODO(synk): dropout omitted (eval-mode identity)
        outs.append(jnp.dot(prob, vh, preferred_element_type=jnp.float32))
        attn_ref[0, h] = prob.astype(attn_ref.dtype)

    out_ref[0] = jnp.concatenate(outs, axis=-1).astype(out_ref.dtype)


def _pick_q_tile(S, max_tq=256):
    """Largest sublane-aligned (multiple of 8) divisor of S <= max_tq, else S."""
    if S <= max_tq:
        return S
    start = max_tq - (max_tq % 8)
    for tq in range(start, 7, -8):
        if S % tq == 0:
            return tq
    return S  # fall back: whole sequence as one tile (equals full dim -> legal)


def pallas_attention(q, k, v, rel, ts, mask_i8, l12, num_heads, tq):
    """q/k/v: (B,S,E); rel/ts: (B,S,S) f32; mask_i8: (B,S,S) int8; l12: (2,) f32."""
    B, S, E = q.shape
    head_size = E // num_heads
    kernel = partial(_attn_kernel, num_heads=num_heads, head_size=head_size)
    out, attn = pl.pallas_call(
        kernel,
        out_shape=(
            jax.ShapeDtypeStruct((B, S, E), jnp.float32),
            jax.ShapeDtypeStruct((B, num_heads, S, S), jnp.float32),
        ),
        grid=(B, S // tq),
        in_specs=[
            pl.BlockSpec(memory_space=pltpu.MemorySpace.SMEM),        # l1, l2
            pl.BlockSpec((1, tq, E), lambda b, qi: (b, qi, 0)),       # q tile
            pl.BlockSpec((1, S, E), lambda b, qi: (b, 0, 0)),         # k (resident per b)
            pl.BlockSpec((1, S, E), lambda b, qi: (b, 0, 0)),         # v (resident per b)
            pl.BlockSpec((1, tq, S), lambda b, qi: (b, qi, 0)),       # rel (no per-head copy)
            pl.BlockSpec((1, tq, S), lambda b, qi: (b, qi, 0)),       # timestamp
            pl.BlockSpec((1, tq, S), lambda b, qi: (b, qi, 0)),       # mask (int8)
        ],
        out_specs=[
            pl.BlockSpec((1, tq, E), lambda b, qi: (b, qi, 0)),
            pl.BlockSpec((1, num_heads, tq, S), lambda b, qi: (b, 0, qi, 0)),
        ],
        compiler_params=pltpu.CompilerParams(
            dimension_semantics=("parallel", "parallel"),
            vmem_limit_bytes=48 * 1024 * 1024),
    )(l12, q, k, v, rel, ts, mask_i8)
    return out, attn


# ---------------------------------------------------------------------------
# Module wrapper (glue in plain JAX: free reshapes only, no transposes)
# ---------------------------------------------------------------------------
class MultiHeadedAttentionPallas:
    def __init__(self, total_size, num_heads, drop_prob, key):
        assert total_size % num_heads == 0
        self.total_size = total_size
        self.num_heads = num_heads
        self.head_size = total_size // num_heads
        self.drop_prob = drop_prob  # TODO(synk): dropout identity (eval mode)
        # Deterministic init mimicking nn.Linear default (uniform +-1/sqrt(fan_in))
        bound = 1.0 / math.sqrt(total_size)
        keys = jax.random.split(key, 6)
        ws, bs = [], []
        for i in range(3):
            w = jax.random.uniform(keys[2 * i], (total_size, total_size),
                                   minval=-bound, maxval=bound, dtype=jnp.float32)
            b = jax.random.uniform(keys[2 * i + 1], (total_size,),
                                   minval=-bound, maxval=bound, dtype=jnp.float32)
            ws.append(w)
            bs.append(b)
        # Pre-transpose once (y = x @ W^T): no per-step XLU transpose in the kernel.
        self.wq_t = ws[0].T
        self.wk_t = ws[1].T
        self.wv_t = ws[2].T
        self.b_stack = jnp.stack(bs)                    # (3, E)

    def __call__(self, query, key, value, rel, l1, l2, timestamp, mask,
                 encode_pos=False, pos_key_embeds=None, pos_value_embeds=None):
        # TODO(synk): relative_attention (encode_pos=True) not implemented.
        assert not encode_pos, "relative_attention path not implemented"
        B, S, E = query.shape
        H = self.num_heads
        M = B * S

        xq = query.reshape(M, E).astype(jnp.float32)
        xk = key.reshape(M, E).astype(jnp.float32)
        xv = value.reshape(M, E).astype(jnp.float32)

        # Fused QKV projection (one pallas_call, three MXU matmuls per step).
        q, k, v = pallas_qkv_projection(xq, xk, xv, self.wq_t, self.wk_t,
                                        self.wv_t, self.b_stack)
        q = q.reshape(B, S, E)
        k = k.reshape(B, S, E)
        v = v.reshape(B, S, E)

        mask_i8 = mask.astype(jnp.int8)                 # 4x fewer HBM bytes than f32
        l12 = jnp.array([l1, l2], dtype=jnp.float32)
        tq = _pick_q_tile(S)

        out, prob_attn = pallas_attention(q, k, v,
                                          rel.astype(jnp.float32),
                                          timestamp.astype(jnp.float32),
                                          mask_i8, l12, H, tq)
        return out, prob_attn


# ---------------------------------------------------------------------------
if __name__ == "__main__":
    B, S, E, H = 2, 8, 32, 2
    root = jax.random.PRNGKey(0)
    kq, kk, kv, krel, kts, kparams = jax.random.split(root, 6)

    query = jax.random.normal(kq, (B, S, E), dtype=jnp.float32)
    key_in = jax.random.normal(kk, (B, S, E), dtype=jnp.float32)
    value = jax.random.normal(kv, (B, S, E), dtype=jnp.float32)
    rel = jax.random.uniform(krel, (B, S, S), dtype=jnp.float32)
    timestamp = jax.random.uniform(kts, (B, S, S), minval=0.0, maxval=10.0,
                                   dtype=jnp.float32)
    # mask True = masked position (same convention as torch masked_fill).
    idx = jnp.arange(S)
    mask = (idx[None, :] > idx[:, None])[None].repeat(B, axis=0)  # (B, S, S) bool
    l1, l2 = 0.3, 0.4

    mha = MultiHeadedAttentionPallas(E, H, drop_prob=0.1, key=kparams)
    out, prob_attn = mha(query, key_in, value, rel, l1, l2, timestamp, mask)
    jax.block_until_ready((out, prob_attn))

    assert out.shape == (B, S, E)
    assert prob_attn.shape == (B, H, S, S)
    assert bool(jnp.all(jnp.isfinite(out)))
    print("KERNEL_OK")
</pallas_src>

<mosaic_0001>
module attributes {stable_mosaic.version = 11 : i64} {
  func.func @_qkv_proj_kernel(%arg0: i32, %arg1: memref<16x32xf32, #tpu.memory_space<vmem>>, %arg2: memref<16x32xf32, #tpu.memory_space<vmem>>, %arg3: memref<16x32xf32, #tpu.memory_space<vmem>>, %arg4: memref<32x32xf32, #tpu.memory_space<vmem>>, %arg5: memref<32x32xf32, #tpu.memory_space<vmem>>, %arg6: memref<32x32xf32, #tpu.memory_space<vmem>>, %arg7: memref<3x32xf32, #tpu.memory_space<vmem>>, %arg8: memref<16x32xf32, #tpu.memory_space<vmem>>, %arg9: memref<16x32xf32, #tpu.memory_space<vmem>>, %arg10: memref<16x32xf32, #tpu.memory_space<vmem>>) attributes {dimension_semantics = [#tpu.dimension_semantics<parallel>], iteration_bounds = array<i64: 1>, scalar_prefetch = 0 : i64, scratch_operands = 0 : i64, tpu.core_type = #tpu.core_type<tc>, window_params = [{transform_indices = @transform_0, window_bounds = array<i64: 16, 32>}, {transform_indices = @transform_1, window_bounds = array<i64: 16, 32>}, {transform_indices = @transform_2, window_bounds = array<i64: 16, 32>}, {pipeline_mode = #tpu.pipeline_mode<synchronous>, transform_indices = @transform_3, window_bounds = array<i64: 32, 32>}, {pipeline_mode = #tpu.pipeline_mode<synchronous>, transform_indices = @transform_4, window_bounds = array<i64: 32, 32>}, {pipeline_mode = #tpu.pipeline_mode<synchronous>, transform_indices = @transform_5, window_bounds = array<i64: 32, 32>}, {pipeline_mode = #tpu.pipeline_mode<synchronous>, transform_indices = @transform_6, window_bounds = array<i64: 3, 32>}, {transform_indices = @transform_7, window_bounds = array<i64: 16, 32>}, {transform_indices = @transform_8, window_bounds = array<i64: 16, 32>}, {transform_indices = @transform_9, window_bounds = array<i64: 16, 32>}]} {
    %c0 = arith.constant 0 : index
    %c0_0 = arith.constant 0 : index
    %0 = vector.load %arg1[%c0, %c0_0] : memref<16x32xf32, #tpu.memory_space<vmem>>, vector<16x32xf32>
    %c0_1 = arith.constant 0 : index
    %c0_2 = arith.constant 0 : index
    %1 = vector.load %arg4[%c0_1, %c0_2] : memref<32x32xf32, #tpu.memory_space<vmem>>, vector<32x32xf32>
    %cst = arith.constant dense<0.000000e+00> : vector<16x32xf32>
    %2 = tpu.matmul %0, %1, %cst {dimension_numbers = #tpu.dot_dimension_numbers<[1], [0], [0], [1], [0, 0, 1, 1], [], []>} : vector<16x32xf32>, vector<32x32xf32>, vector<16x32xf32> -> vector<16x32xf32>
    %c0_3 = arith.constant 0 : index
    %c0_4 = arith.constant 0 : index
    %3 = vector.load %arg7[%c0_3, %c0_4] : memref<3x32xf32, #tpu.memory_space<vmem>>, vector<1x32xf32>
    %4 = vector.broadcast %3 : vector<1x32xf32> to vector<16x32xf32>
    %5 = arith.addf %2, %4 : vector<16x32xf32>
    %c0_5 = arith.constant 0 : index
    %c0_6 = arith.constant 0 : index
    %6 = vector.load %arg8[%c0_5, %c0_6] : memref<16x32xf32, #tpu.memory_space<vmem>>, vector<16x32xf32>
    tpu.vector_store %arg8[%c0_5, %c0_6], %5 {strides = array<i32>} : memref<16x32xf32, #tpu.memory_space<vmem>>, vector<16x32xf32>,
    %c0_7 = arith.constant 0 : index
    %c0_8 = arith.constant 0 : index
    %7 = vector.load %arg2[%c0_7, %c0_8] : memref<16x32xf32, #tpu.memory_space<vmem>>, vector<16x32xf32>
    %c0_9 = arith.constant 0 : index
    %c0_10 = arith.constant 0 : index
    %8 = vector.load %arg5[%c0_9, %c0_10] : memref<32x32xf32, #tpu.memory_space<vmem>>, vector<32x32xf32>
    %cst_11 = arith.constant dense<0.000000e+00> : vector<16x32xf32>
    %9 = tpu.matmul %7, %8, %cst_11 {dimension_numbers = #tpu.dot_dimension_numbers<[1], [0], [0], [1], [0, 0, 1, 1], [], []>} : vector<16x32xf32>, vector<32x32xf32>, vector<16x32xf32> -> vector<16x32xf32>
    %c1 = arith.constant 1 : index
    %c0_12 = arith.constant 0 : index
    %10 = vector.load %arg7[%c1, %c0_12] : memref<3x32xf32, #tpu.memory_space<vmem>>, vector<1x32xf32>
    %11 = vector.broadcast %10 : vector<1x32xf32> to vector<16x32xf32>
    %12 = arith.addf %9, %11 : vector<16x32xf32>
    %c0_13 = arith.constant 0 : index
    %c0_14 = arith.constant 0 : index
    %13 = vector.load %arg9[%c0_13, %c0_14] : memref<16x32xf32, #tpu.memory_space<vmem>>, vector<16x32xf32>
    tpu.vector_store %arg9[%c0_13, %c0_14], %12 {strides = array<i32>} : memref<16x32xf32, #tpu.memory_space<vmem>>, vector<16x32xf32>,
    %c0_15 = arith.constant 0 : index
    %c0_16 = arith.constant 0 : index
    %14 = vector.load %arg3[%c0_15, %c0_16] : memref<16x32xf32, #tpu.memory_space<vmem>>, vector<16x32xf32>
    %c0_17 = arith.constant 0 : index
    %c0_18 = arith.constant 0 : index
    %15 = vector.load %arg6[%c0_17, %c0_18] : memref<32x32xf32, #tpu.memory_space<vmem>>, vector<32x32xf32>
    %cst_19 = arith.constant dense<0.000000e+00> : vector<16x32xf32>
    %16 = tpu.matmul %14, %15, %cst_19 {dimension_numbers = #tpu.dot_dimension_numbers<[1], [0], [0], [1], [0, 0, 1, 1], [], []>} : vector<16x32xf32>, vector<32x32xf32>, vector<16x32xf32> -> vector<16x32xf32>
    %c2 = arith.constant 2 : index
    %c0_20 = arith.constant 0 : index
    %17 = vector.load %arg7[%c2, %c0_20] : memref<3x32xf32, #tpu.memory_space<vmem>>, vector<1x32xf32>
    %18 = vector.broadcast %17 : vector<1x32xf32> to vector<16x32xf32>
    %19 = arith.addf %16, %18 : vector<16x32xf32>
    %c0_21 = arith.constant 0 : index
    %c0_22 = arith.constant 0 : index
    %20 = vector.load %arg10[%c0_21, %c0_22] : memref<16x32xf32, #tpu.memory_space<vmem>>, vector<16x32xf32>
    tpu.vector_store %arg10[%c0_21, %c0_22], %19 {strides = array<i32>} : memref<16x32xf32, #tpu.memory_space<vmem>>, vector<16x32xf32>,
    return
  }
  func.func @transform_0(%arg0: i32) -> (i32, i32) {
    %c0_i32 = arith.constant 0 : i32
    %c0_i32_0 = arith.constant 0 : i32
    return %arg0, %c0_i32 : i32, i32
  }
  func.func @transform_1(%arg0: i32) -> (i32, i32) {
    %c0_i32 = arith.constant 0 : i32
    %c0_i32_0 = arith.constant 0 : i32
    return %arg0, %c0_i32 : i32, i32
  }
  func.func @transform_2(%arg0: i32) -> (i32, i32) {
    %c0_i32 = arith.constant 0 : i32
    %c0_i32_0 = arith.constant 0 : i32
    return %arg0, %c0_i32 : i32, i32
  }
  func.func @transform_3(%arg0: i32) -> (i32, i32) {
    %c0_i32 = arith.constant 0 : i32
    %c0_i32_0 = arith.constant 0 : i32
    %c0_i32_1 = arith.constant 0 : i32
    return %c0_i32, %c0_i32_0 : i32, i32
  }
  func.func @transform_4(%arg0: i32) -> (i32, i32) {
    %c0_i32 = arith.constant 0 : i32
    %c0_i32_0 = arith.constant 0 : i32
    %c0_i32_1 = arith.constant 0 : i32
    return %c0_i32, %c0_i32_0 : i32, i32
  }
  func.func @transform_5(%arg0: i32) -> (i32, i32) {
    %c0_i32 = arith.constant 0 : i32
    %c0_i32_0 = arith.constant 0 : i32
    %c0_i32_1 = arith.constant 0 : i32
    return %c0_i32, %c0_i32_0 : i32, i32
  }
  func.func @transform_6(%arg0: i32) -> (i32, i32) {
    %c0_i32 = arith.constant 0 : i32
    %c0_i32_0 = arith.constant 0 : i32
    %c0_i32_1 = arith.constant 0 : i32
    return %c0_i32, %c0_i32_0 : i32, i32
  }
  func.func @transform_7(%arg0: i32) -> (i32, i32) {
    %c0_i32 = arith.constant 0 : i32
    %c0_i32_0 = arith.constant 0 : i32
    return %arg0, %c0_i32 : i32, i32
  }
  func.func @transform_8(%arg0: i32) -> (i32, i32) {
    %c0_i32 = arith.constant 0 : i32
    %c0_i32_0 = arith.constant 0 : i32
    return %arg0, %c0_i32 : i32, i32
  }
  func.func @transform_9(%arg0: i32) -> (i32, i32) {
    %c0_i32 = arith.constant 0 : i32
    %c0_i32_0 = arith.constant 0 : i32
    return %arg0, %c0_i32 : i32, i32
  }
}

</mosaic_0001>

<llo_original>
// kernel: tpu_custom_call.1
$region0: #{tpu_custom_call.1}
  #allocation0 [shape = 'u32[]', space=smem, size = 0x4, offset = 0x4, fixed_abs, tag = 'smem constant byte address 0x4 - core index']
  #allocation1 [shape = 'u32[144,128]{1,0:T(1,128)}', space=vmem, size = 0x12000, scoped, tag = 'internal scratch']
  %s0 = inlined_call_operand.hbm [shape: f32[16,32], index: 0, kind: input, shape index: {}]
  %s1 = inlined_call_operand.hbm [shape: f32[16,32], index: 1, kind: input, shape index: {}]
  %s2 = inlined_call_operand.hbm [shape: f32[16,32], index: 2, kind: input, shape index: {}]
  %s3 = inlined_call_operand.hbm [shape: f32[32,32], index: 3, kind: input, shape index: {}]
  %s4 = inlined_call_operand.hbm [shape: f32[32,32], index: 4, kind: input, shape index: {}]
  %s5 = inlined_call_operand.hbm [shape: f32[32,32], index: 5, kind: input, shape index: {}]
  %s6 = inlined_call_operand.vmem [shape: f32[3,32], index: 6, kind: input, shape index: {}]
  %s7 = inlined_call_operand.hbm [shape: f32[16,32], index: 7, kind: output, shape index: {0}]
  %s8 = inlined_call_operand.hbm [shape: f32[16,32], index: 8, kind: output, shape index: {1}]
  %s9 = inlined_call_operand.hbm [shape: f32[16,32], index: 9, kind: output, shape index: {2}]
  %10 = xla_tuple %s7, %s8, %s9
  %s11 = sld [smem:[#allocation0]]
  $region78: #{tpu_custom_call.1} parent=0
    _
  %s13 = ssub.s32 1, %s11
  %s14 = scalar_select 0, %s13, %s11
  $region1: #{tpu_custom_call.1} parent=0
    #allocation2 [shape = 'u8[8192]{0}', space=vmem, size = 0x2000, scoped, tag = 'input window, operand 0, single buffered']
    #allocation3 [shape = 's32[1]{0}', space=sflag, size = 0x4, scoped, tag = 'scoped memory for tpu_custom_call.1']
    #allocation4 [shape = 's32[1]{0}', space=sflag, size = 0x4, scoped, tag = 'scoped memory for tpu_custom_call.1']
    #allocation5 [shape = 'u8[8192]{0}', space=vmem, size = 0x2000, scoped, tag = 'input window, operand 1, single buffered']
    #allocation6 [shape = 's32[1]{0}', space=sflag, size = 0x4, scoped, tag = 'scoped memory for tpu_custom_call.1']
    #allocation7 [shape = 'u8[8192]{0}', space=vmem, size = 0x2000, scoped, tag = 'input window, operand 2, single buffered']
    #allocation8 [shape = 'u8[16384]{0}', space=vmem, size = 0x4000, scoped, tag = 'input window, operand 3, single buffered']
    #allocation9 [shape = 's32[1]{0}', space=sflag, size = 0x4, scoped, tag = 'scoped memory for tpu_custom_call.1']
    #allocation10 [shape = 'u8[16384]{0}', space=vmem, size = 0x4000, scoped, tag = 'input window, operand 4, single buffered']
    #allocation11 [shape = 'u8[16384]{0}', space=vmem, size = 0x4000, scoped, tag = 'input window, operand 5, single buffered']
    #allocation12 [shape = 's32[1]{0}', space=sflag, size = 0x4, scoped, tag = 'scoped memory for tpu_custom_call.1']
    #allocation13 [shape = 'u8[8192]{0}', space=vmem, size = 0x2000, scoped, tag = 'output window, operand 0, single buffered']
    #allocation14 [shape = 'u8[8192]{0}', space=vmem, size = 0x2000, scoped, tag = 'output window, operand 1, single buffered']
    #allocation15 [shape = 's32[1]{0}', space=sflag, size = 0x4, scoped, tag = 'scoped memory for tpu_custom_call.1']
    #allocation16 [shape = 'u8[8192]{0}', space=vmem, size = 0x2000, scoped, tag = 'output window, operand 2, single buffered']
    %15 = vsyncpa [#allocation3], 0
    %16 = vsyncpa [#allocation6], 0
    %17 = vsyncpa [#allocation9], 0
    %18 = vsyncpa [#allocation12], 0
    %19 = vsyncpa [#allocation4], 0
    %20 = vsyncpa [#allocation15], 0
    // Predicated region
    $region2: #{tpu_custom_call.1} parent=1 // pred_check
      _
    $region3: #{tpu_custom_call.1} parent=1 // pred_check_branch
      %22 = sbr.rel (0) target = $region5
    $region4: #{tpu_custom_call.1} parent=1 // pred_region
      %s24 = ssub.s32 256, 256
      %25 = vsyncadd [#allocation3], %s24
      %s26 = sshll.u32 [#allocation2], 4
      %s27 = int_to_ptr.vmem [resolvable:$true] %s26
      %32 = dma.hbm_to_vmem [thread:$0]  %s0, 256, %s27, [#allocation3], 128, 128, 8
    $region5: #{tpu_custom_call.1} parent=1 // pred_fallthru
      _
    // Predicated region
    $region6: #{tpu_custom_call.1} parent=1 // pred_check
      _
    $region7: #{tpu_custom_call.1} parent=1 // pred_check_branch
      %34 = sbr.rel (0) target = $region9
    $region8: #{tpu_custom_call.1} parent=1 // pred_region
      %s36 = ssub.s32 256, 256
      %37 = vsyncadd [#allocation6], %s36
      %s38 = sshll.u32 [#allocation5], 4
      %s39 = int_to_ptr.vmem [resolvable:$true] %s38
      %44 = dma.hbm_to_vmem [thread:$0]  %s1, 256, %s39, [#allocation6], 128, 128, 8
    $region9: #{tpu_custom_call.1} parent=1 // pred_fallthru
      _
    // Predicated region
    $region10: #{tpu_custom_call.1} parent=1 // pred_check
      _
    $region11: #{tpu_custom_call.1} parent=1 // pred_check_branch
      %46 = sbr.rel (0) target = $region13
    $region12: #{tpu_custom_call.1} parent=1 // pred_region
      %s48 = ssub.s32 256, 256
      %49 = vsyncadd [#allocation6], %s48
      %s50 = sshll.u32 [#allocation7], 4
      %s51 = int_to_ptr.vmem [resolvable:$true] %s50
      %56 = dma.hbm_to_vmem [thread:$0]  %s2, 256, %s51, [#allocation6], 128, 128, 8
    $region13: #{tpu_custom_call.1} parent=1 // pred_fallthru
      _
    // Predicated region
    $region14: #{tpu_custom_call.1} parent=1 // pred_check
      _
    $region15: #{tpu_custom_call.1} parent=1 // pred_check_branch
      %58 = sbr.rel (0) target = $region17
    $region16: #{tpu_custom_call.1} parent=1 // pred_region
      %s60 = ssub.s32 512, 512
      %61 = vsyncadd [#allocation9], %s60
      %s62 = sshll.u32 [#allocation8], 4
      %s63 = int_to_ptr.vmem [resolvable:$true] %s62
      %68 = dma.hbm_to_vmem [thread:$0]  %s3, 512, %s63, [#allocation9], 128, 128, 8
    $region17: #{tpu_custom_call.1} parent=1 // pred_fallthru
      _
    // Predicated region
    $region18: #{tpu_custom_call.1} parent=1 // pred_check
      _
    $region19: #{tpu_custom_call.1} parent=1 // pred_check_branch
      %70 = sbr.rel (0) target = $region21
    $region20: #{tpu_custom_call.1} parent=1 // pred_region
      %s72 = ssub.s32 512, 512
      %73 = vsyncadd [#allocation9], %s72
      %s74 = sshll.u32 [#allocation10], 4
      %s75 = int_to_ptr.vmem [resolvable:$true] %s74
      %80 = dma.hbm_to_vmem [thread:$0]  %s4, 512, %s75, [#allocation9], 128, 128, 8
    $region21: #{tpu_custom_call.1} parent=1 // pred_fallthru
      _
    // Predicated region
    $region22: #{tpu_custom_call.1} parent=1 // pred_check
      _
    $region23: #{tpu_custom_call.1} parent=1 // pred_check_branch
      %82 = sbr.rel (0) target = $region25
    $region24: #{tpu_custom_call.1} parent=1 // pred_region
      %s84 = ssub.s32 512, 512
      %85 = vsyncadd [#allocation12], %s84
      %s86 = sshll.u32 [#allocation11], 4
      %s87 = int_to_ptr.vmem [resolvable:$true] %s86
      %92 = dma.hbm_to_vmem [thread:$0]  %s5, 512, %s87, [#allocation12], 128, 128, 8
    $region25: #{tpu_custom_call.1} parent=1 // pred_fallthru
      _
    // Predicated region
    $region26: #{tpu_custom_call.1} parent=1 // pred_check
      _
    $region27: #{tpu_custom_call.1} parent=1 // pred_check_branch
      %94 = sbr.rel (0) target = $region29
    $region28: #{tpu_custom_call.1} parent=1 // pred_region
      _
    $region29: #{tpu_custom_call.1} parent=1 // pred_fallthru
      _
    // Predicated region
    $region30: #{tpu_custom_call.1} parent=1 // pred_check
      _
    $region31: #{tpu_custom_call.1} parent=1 // pred_check_branch
      %96 = sbr.rel (0) target = $region33
    $region32: #{tpu_custom_call.1} parent=1 // pred_region
      %97 = dma.done [#allocation3], 256
    $region33: #{tpu_custom_call.1} parent=1 // pred_fallthru
      _
    // Predicated region
    $region34: #{tpu_custom_call.1} parent=1 // pred_check
      _
    $region35: #{tpu_custom_call.1} parent=1 // pred_check_branch
      %99 = sbr.rel (0) target = $region37
    $region36: #{tpu_custom_call.1} parent=1 // pred_region
      %100 = dma.done [#allocation6], 256
    $region37: #{tpu_custom_call.1} parent=1 // pred_fallthru
      _
    // Predicated region
    $region38: #{tpu_custom_call.1} parent=1 // pred_check
      _
    $region39: #{tpu_custom_call.1} parent=1 // pred_check_branch
      %102 = sbr.rel (0) target = $region41
    $region40: #{tpu_custom_call.1} parent=1 // pred_region
      %103 = dma.done [#allocation6], 256
    $region41: #{tpu_custom_call.1} parent=1 // pred_fallthru
      _
    // Predicated region
    $region42: #{tpu_custom_call.1} parent=1 // pred_check
      _
    $region43: #{tpu_custom_call.1} parent=1 // pred_check_branch
      %105 = sbr.rel (0) target = $region45
    $region44: #{tpu_custom_call.1} parent=1 // pred_region
      %106 = dma.done [#allocation9], 512
    $region45: #{tpu_custom_call.1} parent=1 // pred_fallthru
      _
    // Predicated region
    $region46: #{tpu_custom_call.1} parent=1 // pred_check
      _
    $region47: #{tpu_custom_call.1} parent=1 // pred_check_branch
      %108 = sbr.rel (0) target = $region49
    $region48: #{tpu_custom_call.1} parent=1 // pred_region
      %109 = dma.done [#allocation9], 512
    $region49: #{tpu_custom_call.1} parent=1 // pred_fallthru
      _
    // Predicated region
    $region50: #{tpu_custom_call.1} parent=1 // pred_check
      _
    $region51: #{tpu_custom_call.1} parent=1 // pred_check_branch
      %111 = sbr.rel (0) target = $region53
    $region52: #{tpu_custom_call.1} parent=1 // pred_region
      %112 = dma.done [#allocation12], 512
    $region53: #{tpu_custom_call.1} parent=1 // pred_fallthru
      _
    %v113 = vld [vmem:[#allocation2] sm:$0xff]
    %v114 = vld [vmem:[#allocation2 + $0x8] sm:$0xff]
    %v115 = vld [vmem:[#allocation8] sm:$0xff]
    %v116 = vld [vmem:[#allocation8 + $0x8] sm:$0xff]
    %v117 = vld [vmem:[#allocation8 + $0x10] sm:$0xff]
    %v118 = vld [vmem:[#allocation8 + $0x18] sm:$0xff]
    %v119 = vld [vmem:[%s6] sm:$0x1]
    %v120 = vlaneseq
    %v121 = vshrl.u32 %v120, 7
    %v122 = vsub.s32 0, %v121
    %v123 = vrot.slane %v119, %v122
    %vm124 = vcmask 261120
    %v126 = vsel %vm124, %v113, 0
    %v129 = vsel %vm124, %v114, 0
    %131 = vmatprep.subr.mxu0 0.0
    %132 = vmatpush1.msra.mxu0 %v115
    %133 = vmatprep.subr.mxu0 0.0
    %134 = vmatpush1.msra.mxu0 %v116
    %135 = vmatprep.subr.mxu0 0.0
    %136 = vmatpush1.msra.mxu0 %v117
    %137 = vmatprep.subr.mxu0 0.0
    %138 = vmatpush1.msra.mxu0 %v118
    %139 = vmatprep.subr.mxu0 0.0
    %140 = vmatpush1.msra.mxu0 0.0
    %141 = vmatprep.subr.mxu0 0.0
    %142 = vmatpush1.msra.mxu0 0.0
    %143 = vmatprep.subr.mxu0 0.0
    %144 = vmatpush1.msra.mxu0 0.0
    %145 = vmatprep.subr.mxu0 0.0
    %146 = vmatpush1.msra.mxu0 0.0
    %147 = vmatprep.subr.mxu0 0.0
    %148 = vmatpush1.msra.mxu0 0.0
    %149 = vmatprep.subr.mxu0 0.0
    %150 = vmatpush1.msra.mxu0 0.0
    %151 = vmatprep.subr.mxu0 0.0
    %152 = vmatpush1.msra.mxu0 0.0
    %153 = vmatprep.subr.mxu0 0.0
    %154 = vmatpush1.msra.mxu0 0.0
    %155 = vmatprep.subr.mxu0 0.0
    %156 = vmatpush1.msra.mxu0 0.0
    %157 = vmatprep.subr.mxu0 0.0
    %158 = vmatpush1.msra.mxu0 0.0
    %159 = vmatprep.subr.mxu0 0.0
    %160 = vmatpush1.msra.mxu0 0.0
    %161 = vmatprep.subr.mxu0 0.0
    %162 = vmatpush1.msra.mxu0 0.0
    %163 = vmatprep.subr.mxu0 0.0
    %164 = vmatpush1.msra.mxu0 0.0
    %165 = vmatprep.subr.mxu0 0.0
    %166 = vmatpush1.msra.mxu0 0.0
    %167 = vmatprep.subr.mxu0 0.0
    %168 = vmatpush1.msra.mxu0 0.0
    %169 = vmatprep.subr.mxu0 0.0
    %170 = vmatpush1.msra.mxu0 0.0
    %171 = vmatprep.subr.mxu0 0.0
    %172 = vmatpush1.msra.mxu0 0.0
    %173 = vmatprep.subr.mxu0 0.0
    %174 = vmatpush1.msra.mxu0 0.0
    %175 = vmatprep.subr.mxu0 0.0
    %176 = vmatpush1.msra.mxu0 0.0
    %177 = vmatprep.subr.mxu0 0.0
    %178 = vmatpush1.msra.mxu0 0.0
    %179 = vmatprep.subr.mxu0 0.0
    %180 = vmatpush1.msra.mxu0 0.0
    %181 = vmatprep.subr.mxu0 0.0
    %182 = vmatpush1.msra.mxu0 0.0
    %183 = vmatprep.subr.mxu0 0.0
    %184 = vmatpush1.msra.mxu0 0.0
    %185 = vmatprep.subr.mxu0 0.0
    %186 = vmatpush1.msra.mxu0 0.0
    %187 = vmatprep.subr.mxu0 0.0
    %188 = vmatpush1.msra.mxu0 0.0
    %189 = vmatprep.subr.mxu0 0.0
    %190 = vmatpush1.msra.mxu0 0.0
    %191 = vmatprep.subr.mxu0 0.0
    %192 = vmatpush1.msra.mxu0 0.0
    %193 = vmatprep.subr.mxu0 0.0
    %194 = vmatpush1.msra.mxu0 0.0
    %195 = vmatprep.mubr.f32.mxu0 0.0
    %196 = vmatmul.mubr.f32.gmra.mrb[0].mxu0 %v126
    %v197 = vpop.f32.mrb[0].mxu0
    %v198 = vadd.f32 %v123, %v197
    %v199 = vpop.f32.mrb[0].mxu0
    %200 = vmatprep.mubr.f32.mxu0 0.0
    %201 = vmatmul.mubr.f32.gmra.mrb[0].mxu0 %v129
    %v202 = vpop.f32.mrb[0].mxu0
    %v203 = vadd.f32 %v123, %v202
    %v204 = vpop.f32.mrb[0].mxu0
    %205 = vdwg.mxu0
    %206 = vst.msk [vmem:[#allocation13] sm:$0xff] %vm124, %v198
    %207 = vst.msk [vmem:[#allocation13 + $0x8] sm:$0xff] %vm124, %v203
    %v208 = vld [vmem:[#allocation5] sm:$0xff]
    %v209 = vld [vmem:[#allocation5 + $0x8] sm:$0xff]
    %v210 = vld [vmem:[#allocation10] sm:$0xff]
    %v211 = vld [vmem:[#allocation10 + $0x8] sm:$0xff]
    %v212 = vld [vmem:[#allocation10 + $0x10] sm:$0xff]
    %v213 = vld [vmem:[#allocation10 + $0x18] sm:$0xff]
    %v214 = vld [vmem:[%s6 + $0x1] sm:$0x1]
    %v215 = vlaneseq
    %v216 = vshrl.u32 %v215, 7
    %v217 = vsub.s32 0, %v216
    %v218 = vrot.slane %v214, %v217
    %v220 = vsel %vm124, %v208, 0
    %v223 = vsel %vm124, %v209, 0
    %225 = vmatprep.subr.mxu0 0.0
    %226 = vmatpush1.msra.mxu0 %v210
    %227 = vmatprep.subr.mxu0 0.0
    %228 = vmatpush1.msra.mxu0 %v211
    %229 = vmatprep.subr.mxu0 0.0
    %230 = vmatpush1.msra.mxu0 %v212
    %231 = vmatprep.subr.mxu0 0.0
    %232 = vmatpush1.msra.mxu0 %v213
    %233 = vmatprep.subr.mxu0 0.0
    %234 = vmatpush1.msra.mxu0 0.0
    %235 = vmatprep.subr.mxu0 0.0
    %236 = vmatpush1.msra.mxu0 0.0
    %237 = vmatprep.subr.mxu0 0.0
    %238 = vmatpush1.msra.mxu0 0.0
    %239 = vmatprep.subr.mxu0 0.0
    %240 = vmatpush1.msra.mxu0 0.0
    %241 = vmatprep.subr.mxu0 0.0
    %242 = vmatpush1.msra.mxu0 0.0
    %243 = vmatprep.subr.mxu0 0.0
    %244 = vmatpush1.msra.mxu0 0.0
    %245 = vmatprep.subr.mxu0 0.0
    %246 = vmatpush1.msra.mxu0 0.0
    %247 = vmatprep.subr.mxu0 0.0
    %248 = vmatpush1.msra.mxu0 0.0
    %249 = vmatprep.subr.mxu0 0.0
    %250 = vmatpush1.msra.mxu0 0.0
    %251 = vmatprep.subr.mxu0 0.0
    %252 = vmatpush1.msra.mxu0 0.0
    %253 = vmatprep.subr.mxu0 0.0
    %254 = vmatpush1.msra.mxu0 0.0
    %255 = vmatprep.subr.mxu0 0.0
    %256 = vmatpush1.msra.mxu0 0.0
    %257 = vmatprep.subr.mxu0 0.0
    %258 = vmatpush1.msra.mxu0 0.0
    %259 = vmatprep.subr.mxu0 0.0
    %260 = vmatpush1.msra.mxu0 0.0
    %261 = vmatprep.subr.mxu0 0.0
    %262 = vmatpush1.msra.mxu0 0.0
    %263 = vmatprep.subr.mxu0 0.0
    %264 = vmatpush1.msra.mxu0 0.0
    %265 = vmatprep.subr.mxu0 0.0
    %266 = vmatpush1.msra.mxu0 0.0
    %267 = vmatprep.subr.mxu0 0.0
    %268 = vmatpush1.msra.mxu0 0.0
    %269 = vmatprep.subr.mxu0 0.0
    %270 = vmatpush1.msra.mxu0 0.0
    %271 = vmatprep.subr.mxu0 0.0
    %272 = vmatpush1.msra.mxu0 0.0
    %273 = vmatprep.subr.mxu0 0.0
    %274 = vmatpush1.msra.mxu0 0.0
    %275 = vmatprep.subr.mxu0 0.0
    %276 = vmatpush1.msra.mxu0 0.0
    %277 = vmatprep.subr.mxu0 0.0
    %278 = vmatpush1.msra.mxu0 0.0
    %279 = vmatprep.subr.mxu0 0.0
    %280 = vmatpush1.msra.mxu0 0.0
    %281 = vmatprep.subr.mxu0 0.0
    %282 = vmatpush1.msra.mxu0 0.0
    %283 = vmatprep.subr.mxu0 0.0
    %284 = vmatpush1.msra.mxu0 0.0
    %285 = vmatprep.subr.mxu0 0.0
    %286 = vmatpush1.msra.mxu0 0.0
    %287 = vmatprep.subr.mxu0 0.0
    %288 = vmatpush1.msra.mxu0 0.0
    %289 = vmatprep.mubr.f32.mxu0 0.0
    %290 = vmatmul.mubr.f32.gmra.mrb[0].mxu0 %v220
    %v291 = vpop.f32.mrb[0].mxu0
    %v292 = vadd.f32 %v218, %v291
    %v293 = vpop.f32.mrb[0].mxu0
    %294 = vmatprep.mubr.f32.mxu0 0.0
    %295 = vmatmul.mubr.f32.gmra.mrb[0].mxu0 %v223
    %v296 = vpop.f32.mrb[0].mxu0
    %v297 = vadd.f32 %v218, %v296
    %v298 = vpop.f32.mrb[0].mxu0
    %299 = vdwg.mxu0
    %300 = vst.msk [vmem:[#allocation14] sm:$0xff] %vm124, %v292
    %301 = vst.msk [vmem:[#allocation14 + $0x8] sm:$0xff] %vm124, %v297
    %v302 = vld [vmem:[#allocation7] sm:$0xff]
    %v303 = vld [vmem:[#allocation7 + $0x8] sm:$0xff]
    %v304 = vld [vmem:[#allocation11] sm:$0xff]
    %v305 = vld [vmem:[#allocation11 + $0x8] sm:$0xff]
    %v306 = vld [vmem:[#allocation11 + $0x10] sm:$0xff]
    %v307 = vld [vmem:[#allocation11 + $0x18] sm:$0xff]
    %v308 = vld [vmem:[%s6 + $0x2] sm:$0x1]
    %v309 = vlaneseq
    %v310 = vshrl.u32 %v309, 7
    %v311 = vsub.s32 0, %v310
    %v312 = vrot.slane %v308, %v311
    %v314 = vsel %vm124, %v302, 0
    %v317 = vsel %vm124, %v303, 0
    %319 = vmatprep.subr.mxu0 0.0
    %320 = vmatpush1.msra.mxu0 %v304
    %321 = vmatprep.subr.mxu0 0.0
    %322 = vmatpush1.msra.mxu0 %v305
    %323 = vmatprep.subr.mxu0 0.0
    %324 = vmatpush1.msra.mxu0 %v306
    %325 = vmatprep.subr.mxu0 0.0
    %326 = vmatpush1.msra.mxu0 %v307
    %327 = vmatprep.subr.mxu0 0.0
    %328 = vmatpush1.msra.mxu0 0.0
    %329 = vmatprep.subr.mxu0 0.0
    %330 = vmatpush1.msra.mxu0 0.0
    %331 = vmatprep.subr.mxu0 0.0
    %332 = vmatpush1.msra.mxu0 0.0
    %333 = vmatprep.subr.mxu0 0.0
    %334 = vmatpush1.msra.mxu0 0.0
    %335 = vmatprep.subr.mxu0 0.0
    %336 = vmatpush1.msra.mxu0 0.0
    %337 = vmatprep.subr.mxu0 0.0
    %338 = vmatpush1.msra.mxu0 0.0
    %339 = vmatprep.subr.mxu0 0.0
    %340 = vmatpush1.msra.mxu0 0.0
    %341 = vmatprep.subr.mxu0 0.0
    %342 = vmatpush1.msra.mxu0 0.0
    %343 = vmatprep.subr.mxu0 0.0
    %344 = vmatpush1.msra.mxu0 0.0
    %345 = vmatprep.subr.mxu0 0.0
    %346 = vmatpush1.msra.mxu0 0.0
    %347 = vmatprep.subr.mxu0 0.0
    %348 = vmatpush1.msra.mxu0 0.0
    %349 = vmatprep.subr.mxu0 0.0
    %350 = vmatpush1.msra.mxu0 0.0
    %351 = vmatprep.subr.mxu0 0.0
    %352 = vmatpush1.msra.mxu0 0.0
    %353 = vmatprep.subr.mxu0 0.0
    %354 = vmatpush1.msra.mxu0 0.0
    %355 = vmatprep.subr.mxu0 0.0
    %356 = vmatpush1.msra.mxu0 0.0
    %357 = vmatprep.subr.mxu0 0.0
    %358 = vmatpush1.msra.mxu0 0.0
    %359 = vmatprep.subr.mxu0 0.0
    %360 = vmatpush1.msra.mxu0 0.0
    %361 = vmatprep.subr.mxu0 0.0
    %362 = vmatpush1.msra.mxu0 0.0
    %363 = vmatprep.subr.mxu0 0.0
    %364 = vmatpush1.msra.mxu0 0.0
    %365 = vmatprep.subr.mxu0 0.0
    %366 = vmatpush1.msra.mxu0 0.0
    %367 = vmatprep.subr.mxu0 0.0
    %368 = vmatpush1.msra.mxu0 0.0
    %369 = vmatprep.subr.mxu0 0.0
    %370 = vmatpush1.msra.mxu0 0.0
    %371 = vmatprep.subr.mxu0 0.0
    %372 = vmatpush1.msra.mxu0 0.0
    %373 = vmatprep.subr.mxu0 0.0
    %374 = vmatpush1.msra.mxu0 0.0
    %375 = vmatprep.subr.mxu0 0.0
    %376 = vmatpush1.msra.mxu0 0.0
    %377 = vmatprep.subr.mxu0 0.0
    %378 = vmatpush1.msra.mxu0 0.0
    %379 = vmatprep.subr.mxu0 0.0
    %380 = vmatpush1.msra.mxu0 0.0
    %381 = vmatprep.subr.mxu0 0.0
    %382 = vmatpush1.msra.mxu0 0.0
    %383 = vmatprep.mubr.f32.mxu0 0.0
    %384 = vmatmul.mubr.f32.gmra.mrb[0].mxu0 %v314
    %v385 = vpop.f32.mrb[0].mxu0
    %v386 = vadd.f32 %v312, %v385
    %v387 = vpop.f32.mrb[0].mxu0
    %388 = vmatprep.mubr.f32.mxu0 0.0
    %389 = vmatmul.mubr.f32.gmra.mrb[0].mxu0 %v317
    %v390 = vpop.f32.mrb[0].mxu0
    %v391 = vadd.f32 %v312, %v390
    %v392 = vpop.f32.mrb[0].mxu0
    %393 = vdwg.mxu0
    %394 = vst.msk [vmem:[#allocation16] sm:$0xff] %vm124, %v386
    %395 = vst.msk [vmem:[#allocation16 + $0x8] sm:$0xff] %vm124, %v391
    // Predicated region
    $region54: #{tpu_custom_call.1} parent=1 // pred_check
      _
    $region55: #{tpu_custom_call.1} parent=1 // pred_check_branch
      %397 = sbr.rel (0) target = $region57
    $region56: #{tpu_custom_call.1} parent=1 // pred_region
      %s399 = ssub.s32 256, 256
      %400 = vsyncadd [#allocation4], %s399
      %s401 = sshll.u32 [#allocation13], 4
      %s402 = int_to_ptr.vmem [resolvable:$true] %s401
      %407 = dma.vmem_to_hbm [thread:$0]  %s402, 256, %s7, [#allocation4], 128, 128, 8
    $region57: #{tpu_custom_call.1} parent=1 // pred_fallthru
      _
    // Predicated region
    $region58: #{tpu_custom_call.1} parent=1 // pred_check
      _
    $region59: #{tpu_custom_call.1} parent=1 // pred_check_branch
      %409 = sbr.rel (0) target = $region61
    $region60: #{tpu_custom_call.1} parent=1 // pred_region
      %s411 = ssub.s32 256, 256
      %412 = vsyncadd [#allocation15], %s411
      %s413 = sshll.u32 [#allocation14], 4
      %s414 = int_to_ptr.vmem [resolvable:$true] %s413
      %419 = dma.vmem_to_hbm [thread:$0]  %s414, 256, %s8, [#allocation15], 128, 128, 8
    $region61: #{tpu_custom_call.1} parent=1 // pred_fallthru
      _
    // Predicated region
    $region62: #{tpu_custom_call.1} parent=1 // pred_check
      _
    $region63: #{tpu_custom_call.1} parent=1 // pred_check_branch
      %421 = sbr.rel (0) target = $region65
    $region64: #{tpu_custom_call.1} parent=1 // pred_region
      %s423 = ssub.s32 256, 256
      %424 = vsyncadd [#allocation15], %s423
      %s425 = sshll.u32 [#allocation16], 4
      %s426 = int_to_ptr.vmem [resolvable:$true] %s425
      %431 = dma.vmem_to_hbm [thread:$0]  %s426, 256, %s9, [#allocation15], 128, 128, 8
    $region65: #{tpu_custom_call.1} parent=1 // pred_fallthru
      _
    // Predicated region
    $region66: #{tpu_custom_call.1} parent=1 // pred_check
      _
    $region67: #{tpu_custom_call.1} parent=1 // pred_check_branch
      %433 = sbr.rel (0) target = $region69
    $region68: #{tpu_custom_call.1} parent=1 // pred_region
      %434 = dma.done [#allocation4], 256
    $region69: #{tpu_custom_call.1} parent=1 // pred_fallthru
      _
    // Predicated region
    $region70: #{tpu_custom_call.1} parent=1 // pred_check
      _
    $region71: #{tpu_custom_call.1} parent=1 // pred_check_branch
      %436 = sbr.rel (0) target = $region73
    $region72: #{tpu_custom_call.1} parent=1 // pred_region
      %437 = dma.done [#allocation15], 256
    $region73: #{tpu_custom_call.1} parent=1 // pred_fallthru
      _
    // Predicated region
    $region74: #{tpu_custom_call.1} parent=1 // pred_check
      _
    $region75: #{tpu_custom_call.1} parent=1 // pred_check_branch
      %439 = sbr.rel (0) target = $region77
    $region76: #{tpu_custom_call.1} parent=1 // pred_region
      %440 = dma.done [#allocation15], 256
    $region77: #{tpu_custom_call.1} parent=1 // pred_fallthru
      _
    %441 = vsyncpa [#allocation3], 1
    %442 = vsyncpa [#allocation6], 1
    %443 = vsyncpa [#allocation9], 1
    %444 = vsyncpa [#allocation12], 1
    %445 = vsyncpa [#allocation4], 1
    %446 = vsyncpa [#allocation15], 1

</llo_original>
